<compile_context>
chip_gen: v6e
topology: v6e:2x2x1
jax: 0.10.0
libtpu: 0.0.40
codegen_flags: <defaults>
</compile_context>

<pallas_src>
import functools

import jax
import jax.numpy as jnp
from jax import lax
from jax.experimental import pallas as pl
from jax.experimental.pallas import tpu as pltpu


_OUT_LANES = 128                    # lane-dense output slab width
_TILE_BYTES = 4 * 1024 * 1024       # per-buffer budget for the streamed proxy tile


def _round_up(x, m):
    return ((x + m - 1) // m) * m


# ---------------------------------------------------------------------------
# Fused kernel.  Grid = (n_splits [parallel], class_tiles [arbitrary reduction]).
#   col 0: sum_c mask[c] * exp(<pos[b], proxies[c]> * invnorm[c] * w - b)   (l2)
#   col 1: exp(-<pos[b], anchor_norm[b]> * w + b)                           (l1)
#   col 2: sum_{j != b} exp(<pos[b], anchor_norm[j]> * w - b)               (l3)
#   col 3: logsumexp_j(<out_anchor[b], P_T[j]> * w - b) - diag              (CE)
# ---------------------------------------------------------------------------
def _fused_mmp_kernel(pos_ref, prox_ref, invn_ref, mask_ref,
                      anch_ref, outa_ref, pt_ref, wb_ref,
                      out_ref, acc_ref, *, compute_dtype):
    w = wb_ref[0]
    b = wb_ref[1]
    k = pl.program_id(1)
    kt = pl.num_programs(1)

    @pl.when(k == 0)
    def _():
        acc_ref[...] = jnp.zeros_like(acc_ref)

    # ---- hot path: (B, D) x (tc, D)^T on the MXU in bf16, f32 accumulate ----
    pos_c = pos_ref[...].astype(compute_dtype)
    prox_c = prox_ref[...].astype(compute_dtype)
    s = lax.dot_general(pos_c, prox_c,
                        dimension_numbers=(((1,), (1,)), ((), ())),
                        preferred_element_type=jnp.float32)          # (B, tc)
    # Fold the proxy normalization in: cos = s * invnorm[c].
    logits = s * invn_ref[...] * w - b
    # NOTE: no max-stabilization, matching the PyTorch reference (bug-compatible).
    # `where` (not multiply-by-mask) so masked / padded classes can never inject
    # inf * 0 = nan into the sum.
    e = jnp.where(mask_ref[...] > 0.5, jnp.exp(logits), 0.0)
    acc_ref[...] += jnp.sum(e, axis=1, keepdims=True)

    # ---- last class tile of this split: small (B x B) terms + packed store ----
    @pl.when(k == kt - 1)
    def _():
        pos = pos_ref[...]
        anch = anch_ref[...]
        outa = outa_ref[...]
        pt = pt_ref[...]
        bsz = pos.shape[0]

        # l1 rows: exp(-<pos, anchor_norm> * w + b)  (elementwise VPU dot, like torch)
        s1 = jnp.sum(pos * anch, axis=1, keepdims=True)              # (B, 1)
        e1 = jnp.exp(-s1 * w + b)

        # l3 rows.  Sum the off-diagonal entries directly instead of
        # rowsum - recomputed_diag: subtracting a VPU-recomputed diagonal from an
        # MXU row-sum can cancel catastrophically (negative -> nan in log) when
        # the diagonal exp dominates.  Mathematically identical to the reference.
        zlog = lax.dot_general(pos, anch,
                               dimension_numbers=(((1,), (1,)), ((), ())),
                               preferred_element_type=jnp.float32) * w - b
        r = lax.broadcasted_iota(jnp.int32, (bsz, bsz), 0)
        c = lax.broadcasted_iota(jnp.int32, (bsz, bsz), 1)
        zrow = jnp.sum(jnp.where(r != c, jnp.exp(zlog), 0.0),
                       axis=1, keepdims=True)

        # CE-regularizer rows (labels = arange(B)): lse(cs) - cs[b, b].
        # Here the diagonal is recomputed directly (no exp cancellation hazard).
        cs = lax.dot_general(outa, pt,
                             dimension_numbers=(((1,), (1,)), ((), ())),
                             preferred_element_type=jnp.float32) * w - b
        m = jnp.max(cs, axis=1, keepdims=True)
        lse = m + jnp.log(jnp.sum(jnp.exp(cs - m), axis=1, keepdims=True))
        diag_cs = jnp.sum(outa * pt, axis=1, keepdims=True) * w - b
        ce = lse - diag_cs

        # Lane-dense packed output: one unmasked (B, 128) store.
        col = lax.broadcasted_iota(jnp.int32, (bsz, _OUT_LANES), 1)
        slab = jnp.where(col == 0, acc_ref[...], 0.0)
        slab = jnp.where(col == 1, e1, slab)
        slab = jnp.where(col == 2, zrow, slab)
        slab = jnp.where(col == 3, ce, slab)
        out_ref[0] = slab


def fused_mmp_terms(pos, proxies, invnorm, others_mask, anchor_norm, out_anchor,
                    p_t, wb, *, n_splits=1, compute_dtype=jnp.bfloat16):
    """Returns an (n_splits, B, 128) slab; see _fused_mmp_kernel for columns."""
    B, D = pos.shape
    C = proxies.shape[0]

    # ---- class-axis tiling: biggest tile fitting the per-buffer VMEM budget ----
    tc_max = max(128, (_TILE_BYTES // (D * proxies.dtype.itemsize)) // 128 * 128)
    per_split = _round_up(pl.cdiv(C, n_splits), 128)
    kt = max(1, pl.cdiv(per_split, tc_max))          # class tiles per split
    tc = _round_up(pl.cdiv(per_split, kt), 128)      # class tile size
    c_pad = n_splits * kt * tc

    if c_pad != C:
        # Padded classes have mask == 0 -> contribute exactly 0 (where-masked).
        proxies = jnp.pad(proxies, ((0, c_pad - C), (0, 0)))
        invnorm = jnp.pad(invnorm, (0, c_pad - C))
        others_mask = jnp.pad(others_mask, (0, c_pad - C))

    invnorm = invnorm.reshape(1, c_pad)
    others_mask = others_mask.reshape(1, c_pad)

    kernel = functools.partial(_fused_mmp_kernel, compute_dtype=compute_dtype)
    return pl.pallas_call(
        kernel,
        out_shape=jax.ShapeDtypeStruct((n_splits, B, _OUT_LANES), jnp.float32),
        grid_spec=pltpu.PrefetchScalarGridSpec(
            num_scalar_prefetch=0,
            grid=(n_splits, kt),
            in_specs=[
                pl.BlockSpec((B, D), lambda s, k: (0, 0)),            # pos (resident)
                pl.BlockSpec((tc, D), lambda s, k: (s * kt + k, 0)),  # raw proxies tile
                pl.BlockSpec((1, tc), lambda s, k: (0, s * kt + k)),  # 1 / ||proxy||
                pl.BlockSpec((1, tc), lambda s, k: (0, s * kt + k)),  # T_others mask
                pl.BlockSpec((B, D), lambda s, k: (0, 0)),            # anchor_norm
                pl.BlockSpec((B, D), lambda s, k: (0, 0)),            # out_anchor
                pl.BlockSpec((B, D), lambda s, k: (0, 0)),            # P[T]
                pl.BlockSpec(memory_space=pltpu.MemorySpace.SMEM),    # (w, b)
            ],
            out_specs=pl.BlockSpec((1, B, _OUT_LANES), lambda s, k: (s, 0, 0)),
            # (B, 1) running exp-sum; the output itself is written once, lane-dense.
            scratch_shapes=[pltpu.VMEM((B, 1), jnp.float32)],
        ),
        compiler_params=pltpu.CompilerParams(
            dimension_semantics=("parallel", "arbitrary"),
            vmem_limit_bytes=32 * 1024 * 1024,
        ),
    )(pos, proxies, invnorm, others_mask, anchor_norm, out_anchor, p_t, wb)


# ---------------------------------------------------------------------------
# Forward pass of MMP_Balance2
# ---------------------------------------------------------------------------
def mmp_balance2_forward(X, T, proxies, w, b, n_classes, _lambda=0.5, *,
                         n_splits=1, compute_dtype=jnp.bfloat16):
    # ---- cheap O(B*D) / O(C) glue -------------------------------------------
    out_anchor = jnp.mean(X[:, 1:, :], axis=1)                 # (B, D)
    out_positive = X[:, 0, :]                                  # (B, D)

    # F.normalize(proxies, dim=1) = x / max(||x||, 1e-12): only the inverse norms
    # are materialized ((C,)); raw proxies stream straight into the kernel.
    pnorm = jnp.sqrt(jnp.sum(proxies * proxies, axis=1))       # (C,)
    invnorm = 1.0 / jnp.maximum(pnorm, 1e-12)

    # l2_norm(out_anchor): adds 1e-12 under the sqrt.
    anchor_norm = out_anchor / jnp.sqrt(
        jnp.sum(out_anchor * out_anchor, axis=1, keepdims=True) + 1e-12)

    # new_center[T] = anchor_norm ; new_center[T_others] = P[T_others]
    # (T assumed to hold distinct labels, as in the reference module).
    others_mask = jnp.ones((n_classes,), jnp.float32).at[T].set(0.0)
    p_t = proxies[T] * invnorm[T][:, None]                     # (B, D) == P[T]

    wb = jnp.stack([w, b]).astype(jnp.float32)                 # scalars -> SMEM

    out = fused_mmp_terms(out_positive, proxies, invnorm, others_mask,
                          anchor_norm, out_anchor, p_t, wb,
                          n_splits=n_splits, compute_dtype=compute_dtype)

    s2 = jnp.sum(out[:, :, 0], axis=0)      # combine per-split partial sums
    e1 = out[0, :, 1]
    zrow = out[0, :, 2]
    ce = out[0, :, 3]

    l1 = jnp.log(jnp.sum(e1) + 1.0)
    l2 = jnp.mean(jnp.log(s2 + 1.0))
    l3 = jnp.mean(jnp.log(zrow + 1.0))
    loss_reg = jnp.mean(ce)

    loss = l1 + l2 + l3 + _lambda * loss_reg
    # NOTE: P_one_hot / N_one_hot (binarize) are dead code in the reference
    # forward and are intentionally not computed.
    return loss, 0


# ---------------------------------------------------------------------------
# Pure-JAX f32 replica of the PyTorch forward (validation only).
# ---------------------------------------------------------------------------
def _reference_forward(X, T, proxies, w, b, n_classes, _lambda=0.5):
    out_anchor = jnp.mean(X[:, 1:, :], axis=1)
    out_positive = X[:, 0, :]
    pnorm = jnp.sqrt(jnp.sum(proxies * proxies, axis=1, keepdims=True))
    P = proxies / jnp.maximum(pnorm, 1e-12)
    anchor_norm = out_anchor / jnp.sqrt(
        jnp.sum(out_anchor * out_anchor, axis=1, keepdims=True) + 1e-12)

    l1 = jnp.log(jnp.sum(jnp.exp(
        -jnp.sum(out_positive * anchor_norm, axis=1) * w + b)) + 1.0)

    others = jnp.ones((n_classes,), bool).at[T].set(False)
    e_all = jnp.where(others[None, :],
                      jnp.exp(out_positive @ P.T * w - b), 0.0)
    l2 = jnp.mean(jnp.log(jnp.sum(e_all, axis=1) + 1.0))

    z = jnp.exp(out_positive @ anchor_norm.T * w - b)
    l3 = jnp.mean(jnp.log(jnp.sum(z, axis=1) - jnp.diag(z) + 1.0))

    cs = out_anchor @ P[T].T * w - b
    lse = jax.scipy.special.logsumexp(cs, axis=1)
    loss_reg = jnp.mean(lse - jnp.diag(cs))
    return l1 + l2 + l3 + _lambda * loss_reg


if __name__ == "__main__":
    key = jax.random.PRNGKey(0)
    B, M, D, C = 8, 3, 128, 512          # batch, utterances, sz_embed, n_classes
    k1, k2, k3 = jax.random.split(key, 3)

    X = jax.random.normal(k1, (B, M, D), dtype=jnp.float32)
    T = jax.random.permutation(k2, C)[:B].astype(jnp.int32)    # distinct labels
    # proxies: kaiming_normal_(mode='fan_out') => std = sqrt(2 / n_classes)
    proxies = jax.random.normal(k3, (C, D), dtype=jnp.float32) * jnp.sqrt(2.0 / C)
    w = jnp.float32(10.0)
    b = jnp.float32(5.0)

    # n_splits=2 exercises the leading "parallel" class-split axis (one chunk per
    # TensorCore on v7x); on single-TC chips it just becomes two reduction chunks.
    loss, zero = mmp_balance2_forward(X, T, proxies, w, b, C, _lambda=0.5,
                                      n_splits=2)
    jax.block_until_ready(loss)
    assert jnp.isfinite(loss)

    loss_ref = _reference_forward(X, T, proxies, w, b, C, _lambda=0.5)
    rel = jnp.abs(loss - loss_ref) / (jnp.abs(loss_ref) + 1.0)
    assert rel < 5e-2, (loss, loss_ref, rel)

    # Non-128-aligned class count + single split: exercises the class padding path.
    C2 = 320
    T2 = jax.random.permutation(k2, C2)[:B].astype(jnp.int32)
    proxies2 = jax.random.normal(k3, (C2, D), dtype=jnp.float32) * jnp.sqrt(2.0 / C2)
    loss2, _ = mmp_balance2_forward(X, T2, proxies2, w, b, C2, _lambda=0.5,
                                    n_splits=1)
    jax.block_until_ready(loss2)
    assert jnp.isfinite(loss2)
    loss2_ref = _reference_forward(X, T2, proxies2, w, b, C2, _lambda=0.5)
    rel2 = jnp.abs(loss2 - loss2_ref) / (jnp.abs(loss2_ref) + 1.0)
    assert rel2 < 5e-2, (loss2, loss2_ref, rel2)

    print("KERNEL_OK")
</pallas_src>

<mosaic_0001>
module attributes {stable_mosaic.version = 11 : i64} {
  func.func @_fused_mmp_kernel(%arg0: i32, %arg1: i32, %arg2: memref<8x128xf32, #tpu.memory_space<vmem>>, %arg3: memref<256x128xf32, #tpu.memory_space<vmem>>, %arg4: memref<1x256xf32, #tpu.memory_space<vmem>>, %arg5: memref<1x256xf32, #tpu.memory_space<vmem>>, %arg6: memref<8x128xf32, #tpu.memory_space<vmem>>, %arg7: memref<8x128xf32, #tpu.memory_space<vmem>>, %arg8: memref<8x128xf32, #tpu.memory_space<vmem>>, %arg9: memref<2xf32, #tpu.memory_space<smem>>, %arg10: memref<1x8x128xf32, #tpu.memory_space<vmem>>, %arg11: memref<8x1xf32, #tpu.memory_space<vmem>>) attributes {dimension_semantics = [#tpu.dimension_semantics<parallel>, #tpu.dimension_semantics<arbitrary>], iteration_bounds = array<i64: 2, 1>, scalar_prefetch = 0 : i64, scratch_operands = 1 : i64, tpu.core_type = #tpu.core_type<tc>, window_params = [{pipeline_mode = #tpu.pipeline_mode<synchronous>, transform_indices = @transform_0, window_bounds = array<i64: 8, 128>}, {transform_indices = @transform_1, window_bounds = array<i64: 256, 128>}, {transform_indices = @transform_2, window_bounds = array<i64: 1, 256>}, {transform_indices = @transform_3, window_bounds = array<i64: 1, 256>}, {pipeline_mode = #tpu.pipeline_mode<synchronous>, transform_indices = @transform_4, window_bounds = array<i64: 8, 128>}, {pipeline_mode = #tpu.pipeline_mode<synchronous>, transform_indices = @transform_5, window_bounds = array<i64: 8, 128>}, {pipeline_mode = #tpu.pipeline_mode<synchronous>, transform_indices = @transform_6, window_bounds = array<i64: 8, 128>}, {transform_indices = @transform_7, window_bounds = array<i64: 2>}, {transform_indices = @transform_8, window_bounds = array<i64: 1, 8, 128>}]} {
    %c0 = arith.constant 0 : index
    %0 = memref.load %arg9[%c0] : memref<2xf32, #tpu.memory_space<smem>>
    %c1 = arith.constant 1 : index
    %1 = memref.load %arg9[%c1] : memref<2xf32, #tpu.memory_space<smem>>
    %c0_i32 = arith.constant 0 : i32
    %2 = arith.cmpi eq, %arg1, %c0_i32 : i32
    %3 = arith.extui %2 : i1 to i32
    %c0_i32_0 = arith.constant 0 : i32
    %4 = arith.cmpi ne, %3, %c0_i32_0 : i32
    scf.if %4 {
      %cst_18 = arith.constant 0.000000e+00 : f32
      %33 = vector.broadcast %cst_18 : f32 to vector<8x1xf32>
      %c0_19 = arith.constant 0 : index
      %c0_20 = arith.constant 0 : index
      %34 = vector.load %arg11[%c0_19, %c0_20] : memref<8x1xf32, #tpu.memory_space<vmem>>, vector<8x1xf32>
      tpu.vector_store %arg11[%c0_19, %c0_20], %33 {strides = array<i32>} : memref<8x1xf32, #tpu.memory_space<vmem>>, vector<8x1xf32>,
    } else {
    }
    %c0_1 = arith.constant 0 : index
    %c0_2 = arith.constant 0 : index
    %5 = vector.load %arg2[%c0_1, %c0_2] : memref<8x128xf32, #tpu.memory_space<vmem>>, vector<8x128xf32>
    %6 = arith.truncf %5 : vector<8x128xf32> to vector<8x128xbf16>
    %c0_3 = arith.constant 0 : index
    %c0_4 = arith.constant 0 : index
    %7 = vector.load %arg3[%c0_3, %c0_4] : memref<256x128xf32, #tpu.memory_space<vmem>>, vector<256x128xf32>
    %8 = arith.truncf %7 : vector<256x128xf32> to vector<256x128xbf16>
    %cst = arith.constant dense<0.000000e+00> : vector<8x256xf32>
    %9 = tpu.matmul %6, %8, %cst {dimension_numbers = #tpu.dot_dimension_numbers<[1], [1], [0], [0], [0, 0, 1, 0], [], []>} : vector<8x128xbf16>, vector<256x128xbf16>, vector<8x256xf32> -> vector<8x256xf32>
    %c0_5 = arith.constant 0 : index
    %c0_6 = arith.constant 0 : index
    %10 = vector.load %arg4[%c0_5, %c0_6] : memref<1x256xf32, #tpu.memory_space<vmem>>, vector<1x256xf32>
    %11 = vector.broadcast %10 : vector<1x256xf32> to vector<8x256xf32>
    %12 = arith.mulf %9, %11 : vector<8x256xf32>
    %13 = vector.broadcast %0 : f32 to vector<8x256xf32>
    %14 = arith.mulf %12, %13 : vector<8x256xf32>
    %15 = vector.broadcast %1 : f32 to vector<8x256xf32>
    %16 = arith.subf %14, %15 : vector<8x256xf32>
    %c0_7 = arith.constant 0 : index
    %c0_8 = arith.constant 0 : index
    %17 = vector.load %arg5[%c0_7, %c0_8] : memref<1x256xf32, #tpu.memory_space<vmem>>, vector<1x256xf32>
    %cst_9 = arith.constant 5.000000e-01 : f32
    %18 = vector.broadcast %cst_9 : f32 to vector<1x256xf32>
    %19 = arith.cmpf ogt, %17, %18 : vector<1x256xf32>
    %20 = math.exp %16 : vector<8x256xf32>
    %cst_10 = arith.constant 0.000000e+00 : f32
    %21 = vector.shape_cast %19 : vector<1x256xi1> to vector<1x256xi1>
    %22 = vector.broadcast %21 : vector<1x256xi1> to vector<8x256xi1>
    %23 = vector.broadcast %cst_10 : f32 to vector<8x256xf32>
    %24 = arith.select %22, %20, %23 : vector<8x256xi1>, vector<8x256xf32>
    %c0_11 = arith.constant 0 : index
    %c0_12 = arith.constant 0 : index
    %25 = vector.load %arg11[%c0_11, %c0_12] : memref<8x1xf32, #tpu.memory_space<vmem>>, vector<8x1xf32>
    %cst_13 = arith.constant dense<0.000000e+00> : vector<8xf32>
    %26 = vector.multi_reduction <add>, %24, %cst_13 [1] : vector<8x256xf32> to vector<8xf32>
    %27 = vector.shape_cast %26 : vector<8xf32> to vector<8x1xf32>
    %28 = arith.addf %25, %27 : vector<8x1xf32>
    %c0_14 = arith.constant 0 : index
    %c0_15 = arith.constant 0 : index
    %29 = vector.load %arg11[%c0_14, %c0_15] : memref<8x1xf32, #tpu.memory_space<vmem>>, vector<8x1xf32>
    tpu.vector_store %arg11[%c0_14, %c0_15], %28 {strides = array<i32>} : memref<8x1xf32, #tpu.memory_space<vmem>>, vector<8x1xf32>,
    %c0_i32_16 = arith.constant 0 : i32
    %30 = arith.cmpi eq, %arg1, %c0_i32_16 : i32
    %31 = arith.extui %30 : i1 to i32
    %c0_i32_17 = arith.constant 0 : i32
    %32 = arith.cmpi ne, %31, %c0_i32_17 : i32
    scf.if %32 {
      %c0_18 = arith.constant 0 : index
      %c0_19 = arith.constant 0 : index
      %33 = vector.load %arg2[%c0_18, %c0_19] : memref<8x128xf32, #tpu.memory_space<vmem>>, vector<8x128xf32>
      %c0_20 = arith.constant 0 : index
      %c0_21 = arith.constant 0 : index
      %34 = vector.load %arg6[%c0_20, %c0_21] : memref<8x128xf32, #tpu.memory_space<vmem>>, vector<8x128xf32>
      %c0_22 = arith.constant 0 : index
      %c0_23 = arith.constant 0 : index
      %35 = vector.load %arg7[%c0_22, %c0_23] : memref<8x128xf32, #tpu.memory_space<vmem>>, vector<8x128xf32>
      %c0_24 = arith.constant 0 : index
      %c0_25 = arith.constant 0 : index
      %36 = vector.load %arg8[%c0_24, %c0_25] : memref<8x128xf32, #tpu.memory_space<vmem>>, vector<8x128xf32>
      %37 = arith.mulf %33, %34 : vector<8x128xf32>
      %cst_26 = arith.constant dense<0.000000e+00> : vector<8xf32>
      %38 = vector.multi_reduction <add>, %37, %cst_26 [1] : vector<8x128xf32> to vector<8xf32>
      %39 = vector.shape_cast %38 : vector<8xf32> to vector<8x1xf32>
      %cst_27 = arith.constant 0.000000e+00 : f32
      %40 = vector.broadcast %cst_27 : f32 to vector<8x1xf32>
      %41 = arith.subf %40, %39 : vector<8x1xf32>
      %42 = vector.broadcast %0 : f32 to vector<8x1xf32>
      %43 = arith.mulf %41, %42 : vector<8x1xf32>
      %44 = vector.broadcast %1 : f32 to vector<8x1xf32>
      %45 = arith.addf %43, %44 : vector<8x1xf32>
      %46 = math.exp %45 : vector<8x1xf32>
      %cst_28 = arith.constant dense<0.000000e+00> : vector<8x8xf32>
      %47 = tpu.matmul %33, %34, %cst_28 {dimension_numbers = #tpu.dot_dimension_numbers<[1], [1], [0], [0], [0, 0, 1, 0], [], []>} : vector<8x128xf32>, vector<8x128xf32>, vector<8x8xf32> -> vector<8x8xf32>
      %48 = vector.broadcast %0 : f32 to vector<8x8xf32>
      %49 = arith.mulf %47, %48 : vector<8x8xf32>
      %50 = vector.broadcast %1 : f32 to vector<8x8xf32>
      %51 = arith.subf %49, %50 : vector<8x8xf32>
      %52 = tpu.iota {dimensions = array<i32: 0>} : vector<8x8xi32>
      %53 = tpu.iota {dimensions = array<i32: 1>} : vector<8x8xi32>
      %54 = arith.cmpi ne, %52, %53 : vector<8x8xi32>
      %55 = math.exp %51 : vector<8x8xf32>
      %cst_29 = arith.constant 0.000000e+00 : f32
      %56 = vector.broadcast %cst_29 : f32 to vector<8x8xf32>
      %57 = arith.select %54, %55, %56 : vector<8x8xi1>, vector<8x8xf32>
      %cst_30 = arith.constant dense<0.000000e+00> : vector<8xf32>
      %58 = vector.multi_reduction <add>, %57, %cst_30 [1] : vector<8x8xf32> to vector<8xf32>
      %59 = vector.shape_cast %58 : vector<8xf32> to vector<8x1xf32>
      %cst_31 = arith.constant dense<0.000000e+00> : vector<8x8xf32>
      %60 = tpu.matmul %35, %36, %cst_31 {dimension_numbers = #tpu.dot_dimension_numbers<[1], [1], [0], [0], [0, 0, 1, 0], [], []>} : vector<8x128xf32>, vector<8x128xf32>, vector<8x8xf32> -> vector<8x8xf32>
      %61 = vector.broadcast %0 : f32 to vector<8x8xf32>
      %62 = arith.mulf %60, %61 : vector<8x8xf32>
      %63 = vector.broadcast %1 : f32 to vector<8x8xf32>
      %64 = arith.subf %62, %63 : vector<8x8xf32>
      %cst_32 = arith.constant dense<0xFF800000> : vector<8xf32>
      %65 = vector.multi_reduction <maximumf>, %64, %cst_32 [1] : vector<8x8xf32> to vector<8xf32>
      %66 = vector.shape_cast %65 : vector<8xf32> to vector<8x1xf32>
      %67 = vector.broadcast %66 : vector<8x1xf32> to vector<8x8xf32>
      %68 = arith.subf %64, %67 : vector<8x8xf32>
      %69 = math.exp %68 : vector<8x8xf32>
      %cst_33 = arith.constant dense<0.000000e+00> : vector<8xf32>
      %70 = vector.multi_reduction <add>, %69, %cst_33 [1] : vector<8x8xf32> to vector<8xf32>
      %71 = vector.shape_cast %70 : vector<8xf32> to vector<8x1xf32>
      %72 = math.log %71 : vector<8x1xf32>
      %73 = arith.addf %66, %72 : vector<8x1xf32>
      %74 = arith.mulf %35, %36 : vector<8x128xf32>
      %cst_34 = arith.constant dense<0.000000e+00> : vector<8xf32>
      %75 = vector.multi_reduction <add>, %74, %cst_34 [1] : vector<8x128xf32> to vector<8xf32>
      %76 = vector.shape_cast %75 : vector<8xf32> to vector<8x1xf32>
      %77 = vector.broadcast %0 : f32 to vector<8x1xf32>
      %78 = arith.mulf %76, %77 : vector<8x1xf32>
      %79 = vector.broadcast %1 : f32 to vector<8x1xf32>
      %80 = arith.subf %78, %79 : vector<8x1xf32>
      %81 = arith.subf %73, %80 : vector<8x1xf32>
      %82 = tpu.iota {dimensions = array<i32: 1>} : vector<8x128xi32>
      %c0_i32_35 = arith.constant 0 : i32
      %83 = vector.broadcast %c0_i32_35 : i32 to vector<8x128xi32>
      %84 = arith.cmpi eq, %82, %83 : vector<8x128xi32>
      %c0_36 = arith.constant 0 : index
      %c0_37 = arith.constant 0 : index
      %85 = vector.load %arg11[%c0_36, %c0_37] : memref<8x1xf32, #tpu.memory_space<vmem>>, vector<8x1xf32>
      %cst_38 = arith.constant 0.000000e+00 : f32
      %86 = vector.shape_cast %85 : vector<8x1xf32> to vector<8x1xf32>
      %87 = vector.broadcast %86 : vector<8x1xf32> to vector<8x128xf32>
      %88 = vector.broadcast %cst_38 : f32 to vector<8x128xf32>
      %89 = arith.select %84, %87, %88 : vector<8x128xi1>, vector<8x128xf32>
      %c1_i32 = arith.constant 1 : i32
      %90 = vector.broadcast %c1_i32 : i32 to vector<8x128xi32>
      %91 = arith.cmpi eq, %82, %90 : vector<8x128xi32>
      %92 = vector.shape_cast %46 : vector<8x1xf32> to vector<8x1xf32>
      %93 = vector.broadcast %92 : vector<8x1xf32> to vector<8x128xf32>
      %94 = arith.select %91, %93, %89 : vector<8x128xi1>, vector<8x128xf32>
      %c2_i32 = arith.constant 2 : i32
      %95 = vector.broadcast %c2_i32 : i32 to vector<8x128xi32>
      %96 = arith.cmpi eq, %82, %95 : vector<8x128xi32>
      %97 = vector.shape_cast %59 : vector<8x1xf32> to vector<8x1xf32>
      %98 = vector.broadcast %97 : vector<8x1xf32> to vector<8x128xf32>
      %99 = arith.select %96, %98, %94 : vector<8x128xi1>, vector<8x128xf32>
      %c3_i32 = arith.constant 3 : i32
      %100 = vector.broadcast %c3_i32 : i32 to vector<8x128xi32>
      %101 = arith.cmpi eq, %82, %100 : vector<8x128xi32>
      %102 = vector.shape_cast %81 : vector<8x1xf32> to vector<8x1xf32>
      %103 = vector.broadcast %102 : vector<8x1xf32> to vector<8x128xf32>
      %104 = arith.select %101, %103, %99 : vector<8x128xi1>, vector<8x128xf32>
      %c0_39 = arith.constant 0 : index
      %c0_40 = arith.constant 0 : index
      %c0_41 = arith.constant 0 : index
      %105 = vector.load %arg10[%c0_39, %c0_40, %c0_41] : memref<1x8x128xf32, #tpu.memory_space<vmem>>, vector<1x8x128xf32>
      %106 = vector.shape_cast %105 : vector<1x8x128xf32> to vector<8x128xf32>
      %107 = vector.shape_cast %104 : vector<8x128xf32> to vector<1x8x128xf32>
      tpu.vector_store %arg10[%c0_39, %c0_40, %c0_41], %107 {strides = array<i32>} : memref<1x8x128xf32, #tpu.memory_space<vmem>>, vector<1x8x128xf32>,
    } else {
    }
    return
  }
  func.func @transform_0(%arg0: i32, %arg1: i32) -> (i32, i32) {
    %c0_i32 = arith.constant 0 : i32
    %c0_i32_0 = arith.constant 0 : i32
    %c0_i32_1 = arith.constant 0 : i32
    return %c0_i32, %c0_i32_0 : i32, i32
  }
  func.func @transform_1(%arg0: i32, %arg1: i32) -> (i32, i32) {
    %c1_i32 = arith.constant 1 : i32
    %0 = arith.muli %arg0, %c1_i32 : i32
    %1 = arith.addi %0, %arg1 : i32
    %c0_i32 = arith.constant 0 : i32
    %c0_i32_0 = arith.constant 0 : i32
    return %1, %c0_i32 : i32, i32
  }
  func.func @transform_2(%arg0: i32, %arg1: i32) -> (i32, i32) {
    %c1_i32 = arith.constant 1 : i32
    %0 = arith.muli %arg0, %c1_i32 : i32
    %1 = arith.addi %0, %arg1 : i32
    %c0_i32 = arith.constant 0 : i32
    %c0_i32_0 = arith.constant 0 : i32
    return %c0_i32, %1 : i32, i32
  }
  func.func @transform_3(%arg0: i32, %arg1: i32) -> (i32, i32) {
    %c1_i32 = arith.constant 1 : i32
    %0 = arith.muli %arg0, %c1_i32 : i32
    %1 = arith.addi %0, %arg1 : i32
    %c0_i32 = arith.constant 0 : i32
    %c0_i32_0 = arith.constant 0 : i32
    return %c0_i32, %1 : i32, i32
  }
  func.func @transform_4(%arg0: i32, %arg1: i32) -> (i32, i32) {
    %c0_i32 = arith.constant 0 : i32
    %c0_i32_0 = arith.constant 0 : i32
    %c0_i32_1 = arith.constant 0 : i32
    return %c0_i32, %c0_i32_0 : i32, i32
  }
  func.func @transform_5(%arg0: i32, %arg1: i32) -> (i32, i32) {
    %c0_i32 = arith.constant 0 : i32
    %c0_i32_0 = arith.constant 0 : i32
    %c0_i32_1 = arith.constant 0 : i32
    return %c0_i32, %c0_i32_0 : i32, i32
  }
  func.func @transform_6(%arg0: i32, %arg1: i32) -> (i32, i32) {
    %c0_i32 = arith.constant 0 : i32
    %c0_i32_0 = arith.constant 0 : i32
    %c0_i32_1 = arith.constant 0 : i32
    return %c0_i32, %c0_i32_0 : i32, i32
  }
  func.func @transform_7(%arg0: i32, %arg1: i32) -> i32 {
    %c0_i32 = arith.constant 0 : i32
    %c0_i32_0 = arith.constant 0 : i32
    return %c0_i32 : i32
  }
  func.func @transform_8(%arg0: i32, %arg1: i32) -> (i32, i32, i32) {
    %c0_i32 = arith.constant 0 : i32
    %c0_i32_0 = arith.constant 0 : i32
    %c0_i32_1 = arith.constant 0 : i32
    return %arg0, %c0_i32, %c0_i32_0 : i32, i32, i32
  }
}

</mosaic_0001>

<llo_original>
// kernel: tpu_custom_call.1
$region0: #{tpu_custom_call.1}
  #allocation0 [shape = 'u32[]', space=smem, size = 0x4, offset = 0x4, fixed_abs, tag = 'smem constant byte address 0x4 - core index']
  #allocation1 [shape = 'u32[144,128]{1,0:T(1,128)}', space=vmem, size = 0x12000, scoped, tag = 'internal scratch']
  #allocation2 [shape = 'f32[8,1]{1,0:T(8,128)}', space=vmem, size = 0x1000, scoped, tag = 'scratch operand']
  %s0 = inlined_call_operand.hbm [shape: f32[8,128], index: 0, kind: input, shape index: {}]
  %s1 = inlined_call_operand.hbm [shape: f32[512,128], index: 1, kind: input, shape index: {}]
  %s2 = inlined_call_operand.hbm [shape: f32[1,512], index: 2, kind: input, shape index: {}]
  %s3 = inlined_call_operand.hbm [shape: f32[1,512], index: 3, kind: input, shape index: {}]
  %s4 = inlined_call_operand.hbm [shape: f32[8,128], index: 4, kind: input, shape index: {}]
  %s5 = inlined_call_operand.vmem [shape: f32[8,128], index: 5, kind: input, shape index: {}]
  %s6 = inlined_call_operand.hbm [shape: f32[8,128], index: 6, kind: input, shape index: {}]
  %s7 = inlined_call_operand.vmem [shape: f32[2], index: 7, kind: input, shape index: {}]
  %s8 = inlined_call_operand.hbm [shape: f32[2,8,128], index: 8, kind: output, shape index: {}]
  %s9 = sld [smem:[#allocation0]]
  $region101: #{tpu_custom_call.1} parent=0
    _
  %s11 = ssub.s32 1, %s9
  %s12 = scalar_select 0, %s11, %s9
  $region1: #{tpu_custom_call.1} parent=0
    #allocation3 [shape = 'u8[4096]{0}', space=vmem, size = 0x1000, scoped, tag = 'input window, operand 0, single buffered']
    #allocation4 [shape = 's32[2]{0}', space=sflag, size = 0x8, scoped, tag = 'scoped memory for tpu_custom_call.1']
    #allocation5 [shape = 's32[2]{0}', space=sflag, size = 0x8, scoped, tag = 'scoped memory for tpu_custom_call.1']
    #allocation6 [shape = 's32[2]{0}', space=sflag, size = 0x8, scoped, tag = 'scoped memory for tpu_custom_call.1']
    #allocation7 [shape = 'u8[262144]{0}', space=vmem, size = 0x40000, scoped, tag = 'input window, operand 1']
    #allocation8 [shape = 's32[2]{0}', space=sflag, size = 0x8, scoped, tag = 'scoped memory for tpu_custom_call.1']
    #allocation9 [shape = 'u8[2048]{0}', space=vmem, size = 0x800, scoped, tag = 'input window, operand 2']
    #allocation10 [shape = 'u8[2048]{0}', space=vmem, size = 0x800, scoped, tag = 'input window, operand 3']
    #allocation11 [shape = 's32[2]{0}', space=sflag, size = 0x8, scoped, tag = 'scoped memory for tpu_custom_call.1']
    #allocation12 [shape = 'u8[4096]{0}', space=vmem, size = 0x1000, scoped, tag = 'input window, operand 4, single buffered']
    #allocation13 [shape = 'u8[4096]{0}', space=vmem, size = 0x1000, scoped, tag = 'input window, operand 6, single buffered']
    #allocation14 [shape = 's32[1]{0}', space=sflag, size = 0x4, scoped, tag = 'scoped memory for tpu_custom_call.1']
    #allocation15 [shape = 'u8[512]{0}', space=smem, size = 0x200, scoped, tag = 'input window, operand 7, single buffered']
    #allocation16 [shape = 'u8[8192]{0}', space=vmem, size = 0x2000, scoped, tag = 'output window, operand 0']
    %13 = vsyncpa [#allocation4], 0
    %14 = vsyncpa [#allocation8], 0
    %s15 = scalar_lea.sflag [#allocation8], 1
    %16 = vsyncpa %s15, 0
    %17 = vsyncpa [#allocation11], 0
    %s18 = scalar_lea.sflag [#allocation11], 1
    %19 = vsyncpa %s18, 0
    %20 = vsyncpa [#allocation14], 0
    %21 = vsyncpa [#allocation6], 0
    %22 = vsyncpa [#allocation5], 0
    %s23 = scalar_lea.sflag [#allocation5], 1
    %24 = vsyncpa %s23, 0
    loop: start=0, step=1, limit=4
    $region2: #{tpu_custom_call.1} parent=1 // loop_pre_header
      _
    $region3: #{tpu_custom_call.1} parent=1 // loop_header
      %s26 = sphi 0, %s30
      %p27 = scmp.ge.s32.totalorder %s26, 4
      %s33 = sphi 0, %s45
      %s34 = sphi 0, %s41
      %s35 = sphi 0, %s33
      %s36 = sphi 0, %s34
      %s37 = sphi 0, %s35
      %s38 = sphi 0, %s36
      %s46 = sphi 0, %s46
      %s48 = sphi 0, %s46
      %s49 = sphi 0, %s48
      %s63 = sphi 0, %s49
      %s71 = sphi 0, %s73
      %s74 = sphi 0, %s71
      %s75 = sphi 0, %s74
      %s91 = sphi 0, %s75
      %s99 = sphi 0, %s101
      %s102 = sphi 0, %s99
      %s103 = sphi 0, %s102
      %s119 = sphi 0, %s103
      %s127 = sphi 0, %s129
      %s130 = sphi 0, %s127
      %s131 = sphi 0, %s130
      %s147 = sphi 0, %s131
      %s151 = sphi 0, %s151
      %s153 = sphi 0, %s151
      %s154 = sphi 0, %s153
      %s168 = sphi 0, %s154
      %s172 = sphi 0, %s172
      %s174 = sphi 0, %s172
      %s175 = sphi 0, %s174
      %s189 = sphi 0, %s175
      %s193 = sphi 0, %s193
      %s195 = sphi 0, %s193
      %s196 = sphi 0, %s195
      %s210 = sphi 0, %s196
      %s214 = sphi 0, %s214
      %s216 = sphi 0, %s214
      %s217 = sphi 0, %s216
      %s231 = sphi 0, %s217
      %s237 = sphi 0, %s239
      %s240 = sphi 0, %s237
      %s241 = sphi 0, %s240
      %s257 = sphi 0, %s241
    $region4: #{tpu_custom_call.1} parent=1 // loop_header_branch
      %29 = sbr.rel (%p27) target = $region8
    $region5: #{tpu_custom_call.1} parent=1 // loop_body
      %s31 = ssub.s32 %s26, 1
      %s32 = ssub.s32 %s26, 2
      %s39 = sadd.s32 1, %s34
      %p40 = scmp.ge.s32.totalorder %s39, 1
      %s41 = scalar_select %p40, 0, %s39
      %s42 = sadd.s32 1, %s33
      %s43 = scalar_select %p40, %s42, %s33
      %p44 = scmp.ge.s32.totalorder %s43, 2
      %s45 = scalar_select %p44, 0, %s43
      %s47 = sadd.s32 %s46, 1
      %p50 = scmp.eq.s32.totalorder %s26, 1
      %p51 = scmp.ne.s32.totalorder %s46, %s48
      %p52 = scmp.eq.s32.totalorder %s26, 0
      %p53 = por %p51, %p52
      %p54 = scmp.ne.s32.totalorder %s46, %s48
      %p55 = scmp.eq.s32.totalorder %s31, 1
      %p56 = por %p54, %p55
      %p57 = scmp.ne.s32.totalorder %s48, %s49
      %p58 = scmp.eq.s32.totalorder %s31, 0
      %p59 = por %p57, %p58
      %p60 = scmp.ne.s32.totalorder %s48, %s49
      %p61 = scmp.eq.s32.totalorder %s32, 1
      %p62 = por %p60, %p61
      %p64 = scmp.ne.s32.totalorder %s49, %s63
      %p65 = scmp.eq.s32.totalorder %s32, 0
      %p66 = por %p64, %p65
      %s67 = sadd.s32 %s33, %s34
      %s68 = sadd.s32 %s45, %s41
      %s69 = ssub.s32 %s67, %s68
      %p70 = scmp.eq.s32.totalorder %s69, 0
      %s72 = sadd.s32 %s71, 1
      %s73 = scalar_select %p70, %s71, %s72
      %p76 = pneg %p70
      %p77 = scmp.eq.s32.totalorder %s26, 1
      %p78 = por %p76, %p77
      %p79 = scmp.ne.s32.totalorder %s71, %s74
      %p80 = scmp.eq.s32.totalorder %s26, 0
      %p81 = por %p79, %p80
      %p82 = scmp.ne.s32.totalorder %s71, %s74
      %p83 = scmp.eq.s32.totalorder %s31, 1
      %p84 = por %p82, %p83
      %p85 = scmp.ne.s32.totalorder %s74, %s75
      %p86 = scmp.eq.s32.totalorder %s31, 0
      %p87 = por %p85, %p86
      %p88 = scmp.ne.s32.totalorder %s74, %s75
      %p89 = scmp.eq.s32.totalorder %s32, 1
      %p90 = por %p88, %p89
      %p92 = scmp.ne.s32.totalorder %s75, %s91
      %p93 = scmp.eq.s32.totalorder %s32, 0
      %p94 = por %p92, %p93
      %s95 = sadd.s32 %s33, %s34
      %s96 = sadd.s32 %s45, %s41
      %s97 = ssub.s32 %s95, %s96
      %p98 = scmp.eq.s32.totalorder %s97, 0
      %s100 = sadd.s32 %s99, 1
      %s101 = scalar_select %p98, %s99, %s100
      %p104 = pneg %p98
      %p105 = scmp.eq.s32.totalorder %s26, 1
      %p106 = por %p104, %p105
      %p107 = scmp.ne.s32.totalorder %s99, %s102
      %p108 = scmp.eq.s32.totalorder %s26, 0
      %p109 = por %p107, %p108
      %p110 = scmp.ne.s32.totalorder %s99, %s102
      %p111 = scmp.eq.s32.totalorder %s31, 1
      %p112 = por %p110, %p111
      %p113 = scmp.ne.s32.totalorder %s102, %s103
      %p114 = scmp.eq.s32.totalorder %s31, 0
      %p115 = por %p113, %p114
      %p116 = scmp.ne.s32.totalorder %s102, %s103
      %p117 = scmp.eq.s32.totalorder %s32, 1
      %p118 = por %p116, %p117
      %p120 = scmp.ne.s32.totalorder %s103, %s119
      %p121 = scmp.eq.s32.totalorder %s32, 0
      %p122 = por %p120, %p121
      %s123 = sadd.s32 %s33, %s34
      %s124 = sadd.s32 %s45, %s41
      %s125 = ssub.s32 %s123, %s124
      %p126 = scmp.eq.s32.totalorder %s125, 0
      %s128 = sadd.s32 %s127, 1
      %s129 = scalar_select %p126, %s127, %s128
      %p132 = pneg %p126
      %p133 = scmp.eq.s32.totalorder %s26, 1
      %p134 = por %p132, %p133
      %p135 = scmp.ne.s32.totalorder %s127, %s130
      %p136 = scmp.eq.s32.totalorder %s26, 0
      %p137 = por %p135, %p136
      %p138 = scmp.ne.s32.totalorder %s127, %s130
      %p139 = scmp.eq.s32.totalorder %s31, 1
      %p140 = por %p138, %p139
      %p141 = scmp.ne.s32.totalorder %s130, %s131
      %p142 = scmp.eq.s32.totalorder %s31, 0
      %p143 = por %p141, %p142
      %p144 = scmp.ne.s32.totalorder %s130, %s131
      %p145 = scmp.eq.s32.totalorder %s32, 1
      %p146 = por %p144, %p145
      %p148 = scmp.ne.s32.totalorder %s131, %s147
      %p149 = scmp.eq.s32.totalorder %s32, 0
      %p150 = por %p148, %p149
      %s152 = sadd.s32 %s151, 1
      %p155 = scmp.eq.s32.totalorder %s26, 1
      %p156 = scmp.ne.s32.totalorder %s151, %s153
      %p157 = scmp.eq.s32.totalorder %s26, 0
      %p158 = por %p156, %p157
      %p159 = scmp.ne.s32.totalorder %s151, %s153
      %p160 = scmp.eq.s32.totalorder %s31, 1
      %p161 = por %p159, %p160
      %p162 = scmp.ne.s32.totalorder %s153, %s154
      %p163 = scmp.eq.s32.totalorder %s31, 0
      %p164 = por %p162, %p163
      %p165 = scmp.ne.s32.totalorder %s153, %s154
      %p166 = scmp.eq.s32.totalorder %s32, 1
      %p167 = por %p165, %p166
      %p169 = scmp.ne.s32.totalorder %s154, %s168
      %p170 = scmp.eq.s32.totalorder %s32, 0
      %p171 = por %p169, %p170
      %s173 = sadd.s32 %s172, 1
      %p176 = scmp.eq.s32.totalorder %s26, 1
      %p177 = scmp.ne.s32.totalorder %s172, %s174
      %p178 = scmp.eq.s32.totalorder %s26, 0
      %p179 = por %p177, %p178
      %p180 = scmp.ne.s32.totalorder %s172, %s174
      %p181 = scmp.eq.s32.totalorder %s31, 1
      %p182 = por %p180, %p181
      %p183 = scmp.ne.s32.totalorder %s174, %s175
      %p184 = scmp.eq.s32.totalorder %s31, 0
      %p185 = por %p183, %p184
      %p186 = scmp.ne.s32.totalorder %s174, %s175
      %p187 = scmp.eq.s32.totalorder %s32, 1
      %p188 = por %p186, %p187
      %p190 = scmp.ne.s32.totalorder %s175, %s189
      %p191 = scmp.eq.s32.totalorder %s32, 0
      %p192 = por %p190, %p191
      %s194 = sadd.s32 %s193, 1
      %p197 = scmp.eq.s32.totalorder %s26, 1
      %p198 = scmp.ne.s32.totalorder %s193, %s195
      %p199 = scmp.eq.s32.totalorder %s26, 0
      %p200 = por %p198, %p199
      %p201 = scmp.ne.s32.totalorder %s193, %s195
      %p202 = scmp.eq.s32.totalorder %s31, 1
      %p203 = por %p201, %p202
      %p204 = scmp.ne.s32.totalorder %s195, %s196
      %p205 = scmp.eq.s32.totalorder %s31, 0
      %p206 = por %p204, %p205
      %p207 = scmp.ne.s32.totalorder %s195, %s196
      %p208 = scmp.eq.s32.totalorder %s32, 1
      %p209 = por %p207, %p208
      %p211 = scmp.ne.s32.totalorder %s196, %s210
      %p212 = scmp.eq.s32.totalorder %s32, 0
      %p213 = por %p211, %p212
      %s215 = sadd.s32 %s214, 1
      %p218 = scmp.eq.s32.totalorder %s26, 1
      %p219 = scmp.ne.s32.totalorder %s214, %s216
      %p220 = scmp.eq.s32.totalorder %s26, 0
      %p221 = por %p219, %p220
      %p222 = scmp.ne.s32.totalorder %s214, %s216
      %p223 = scmp.eq.s32.totalorder %s31, 1
      %p224 = por %p222, %p223
      %p225 = scmp.ne.s32.totalorder %s216, %s217
      %p226 = scmp.eq.s32.totalorder %s31, 0
      %p227 = por %p225, %p226
      %p228 = scmp.ne.s32.totalorder %s216, %s217
      %p229 = scmp.eq.s32.totalorder %s32, 1
      %p230 = por %p228, %p229
      %p232 = scmp.ne.s32.totalorder %s217, %s231
      %p233 = scmp.eq.s32.totalorder %s32, 0
      %p234 = por %p232, %p233
      %s235 = ssub.s32 %s33, %s45
      %p236 = scmp.eq.s32.totalorder %s235, 0
      %s238 = sadd.s32 %s237, 1
      %s239 = scalar_select %p236, %s237, %s238
      %p242 = pneg %p236
      %p243 = scmp.eq.s32.totalorder %s26, 1
      %p244 = por %p242, %p243
      %p245 = scmp.ne.s32.totalorder %s237, %s240
      %p246 = scmp.eq.s32.totalorder %s26, 0
      %p247 = por %p245, %p246
      %p248 = scmp.ne.s32.totalorder %s237, %s240
      %p249 = scmp.eq.s32.totalorder %s31, 1
      %p250 = por %p248, %p249
      %p251 = scmp.ne.s32.totalorder %s240, %s241
      %p252 = scmp.eq.s32.totalorder %s31, 0
      %p253 = por %p251, %p252
      %p254 = scmp.ne.s32.totalorder %s240, %s241
      %p255 = scmp.eq.s32.totalorder %s32, 1
      %p256 = por %p254, %p255
      %p258 = scmp.ne.s32.totalorder %s241, %s257
      %p259 = scmp.eq.s32.totalorder %s32, 0
      %p260 = por %p258, %p259
      %p261 = scmp.le.s32.totalorder 1, %s26
      %p262 = scmp.lt.s32.totalorder %s26, 3
      %p263 = pnand %p261, %p262
      %p264 = pneg %p263
      // Predicated region
      $region9: #{tpu_custom_call.1} parent=5 // pred_check
        _
      $region10: #{tpu_custom_call.1} parent=5 // pred_check_branch
        %266 = sbr.rel (%p263) target = $region12
      $region11: #{tpu_custom_call.1} parent=5 // pred_region
        %s267 = ssub.s32 %s26, 1
        // Predicated region
        $region13: #{tpu_custom_call.1} parent=11 // pred_check
          %p268 = pneg %p59
        $region14: #{tpu_custom_call.1} parent=11 // pred_check_branch
          %270 = sbr.rel (%p268) target = $region16
        $region15: #{tpu_custom_call.1} parent=11 // pred_region
          %s272 = ssub.s32 128, 128
          %273 = vsyncadd [#allocation4], %s272
          %s275 = sshll.u32 [#allocation3], 4
          %s276 = int_to_ptr.vmem [resolvable:$true] %s275
          %278 = dma.hbm_to_vmem [thread:$0]  %s0, 128, %s276, [#allocation4]
        $region16: #{tpu_custom_call.1} parent=11 // pred_fallthru
          _
        // Predicated region
        $region17: #{tpu_custom_call.1} parent=11 // pred_check
          %p279 = pneg %p164
        $region18: #{tpu_custom_call.1} parent=11 // pred_check_branch
          %281 = sbr.rel (%p279) target = $region20
        $region19: #{tpu_custom_call.1} parent=11 // pred_region
          %s283 = ssub.s32 128, 128
          %284 = vsyncadd [#allocation11], %s283
          %s286 = sshll.u32 [#allocation12], 4
          %s287 = int_to_ptr.vmem [resolvable:$true] %s286
          %289 = dma.hbm_to_vmem [thread:$0]  %s4, 128, %s287, [#allocation11]
        $region20: #{tpu_custom_call.1} parent=11 // pred_fallthru
          _
        // Predicated region
        $region21: #{tpu_custom_call.1} parent=11 // pred_check
          %p290 = pneg %p185
        $region22: #{tpu_custom_call.1} parent=11 // pred_check_branch
          %292 = sbr.rel (%p290) target = $region24
        $region23: #{tpu_custom_call.1} parent=11 // pred_region
          _
        $region24: #{tpu_custom_call.1} parent=11 // pred_fallthru
          _
        // Predicated region
        $region25: #{tpu_custom_call.1} parent=11 // pred_check
          %p293 = pneg %p206
        $region26: #{tpu_custom_call.1} parent=11 // pred_check_branch
          %295 = sbr.rel (%p293) target = $region28
        $region27: #{tpu_custom_call.1} parent=11 // pred_region
          %s297 = ssub.s32 128, 128
          %298 = vsyncadd [#allocation14], %s297
          %s300 = sshll.u32 [#allocation13], 4
          %s301 = int_to_ptr.vmem [resolvable:$true] %s300
          %303 = dma.hbm_to_vmem [thread:$0]  %s6, 128, %s301, [#allocation14]
        $region28: #{tpu_custom_call.1} parent=11 // pred_fallthru
          _
        // Predicated region
        $region29: #{tpu_custom_call.1} parent=11 // pred_check
          %p304 = pneg %p227
        $region30: #{tpu_custom_call.1} parent=11 // pred_check_branch
          %306 = sbr.rel (%p304) target = $region32
        $region31: #{tpu_custom_call.1} parent=11 // pred_region
          %s308 = ssub.s32 16, 16
          %309 = vsyncadd [#allocation6], %s308
          %s311 = sshll.u32 %s7, 4
          %s312 = int_to_ptr.vmem [resolvable:$true] %s311
          %314 = dma.vmem_to_smem %s312, 16, [#allocation15], [#allocation6]
        $region32: #{tpu_custom_call.1} parent=11 // pred_fallthru
          _
      $region12: #{tpu_custom_call.1} parent=5 // pred_fallthru
        _
      %p315 = scmp.lt.s32.totalorder %s26, 2
      // Predicated region
      $region33: #{tpu_custom_call.1} parent=5 // pred_check
        %p316 = pneg %p315
      $region34: #{tpu_custom_call.1} parent=5 // pred_check_branch
        %318 = sbr.rel (%p316) target = $region36
      $region35: #{tpu_custom_call.1} parent=5 // pred_region
        // Predicated region
        $region37: #{tpu_custom_call.1} parent=35 // pred_check
          %p319 = pneg %p81
        $region38: #{tpu_custom_call.1} parent=35 // pred_check_branch
          %321 = sbr.rel (%p319) target = $region40
        $region39: #{tpu_custom_call.1} parent=35 // pred_region
          %s322 = sand.u32 %s26, 1
          %s323 = scalar_lea.sflag [#allocation8], %s322
          %s324 = sand.u32 %s71, 1
          %s325 = smul.addr %s324, 256
          %s326 = scalar_lea.vmem [#allocation7], %s325
          %s327 = sadd.s32 %s33, %s34
          %s328 = smul.u32 32, %s327
          %s330 = ssub.s32 4096, 4096
          %331 = vsyncadd %s323, %s330
          %s332 = smul.addr %s328, 128
          %s333 = scalar_lea.hbm %s1, %s332
          %s334 = sshll.u32 %s326, 4
          %s335 = int_to_ptr.vmem [resolvable:$true] %s334
          %340 = dma.hbm_to_vmem [thread:$0]  %s333, 4096, %s335, %s323, 128, 128, 8
        $region40: #{tpu_custom_call.1} parent=35 // pred_fallthru
          _
        // Predicated region
        $region41: #{tpu_custom_call.1} parent=35 // pred_check
          %p341 = pneg %p109
        $region42: #{tpu_custom_call.1} parent=35 // pred_check_branch
          %343 = sbr.rel (%p341) target = $region44
        $region43: #{tpu_custom_call.1} parent=35 // pred_region
          %s344 = sand.u32 %s26, 1
          %s345 = scalar_lea.sflag [#allocation8], %s344
          %s346 = sand.u32 %s99, 1
          %s347 = smul.addr %s346, 2
          %s348 = scalar_lea.vmem [#allocation9], %s347
          %s349 = sadd.s32 %s33, %s34
          %s350 = smul.u32 2, %s349
          %s352 = ssub.s32 32, 32
          %353 = vsyncadd %s345, %s352
          %s354 = smul.addr %s350, 16
          %s355 = scalar_lea.hbm %s2, %s354
          %s357 = sshll.u32 %s348, 4
          %s358 = int_to_ptr.vmem [resolvable:$true] %s357
          %360 = dma.hbm_to_vmem [thread:$0]  %s355, 32, %s358, %s345
        $region44: #{tpu_custom_call.1} parent=35 // pred_fallthru
          _
        // Predicated region
        $region45: #{tpu_custom_call.1} parent=35 // pred_check
          %p361 = pneg %p137
        $region46: #{tpu_custom_call.1} parent=35 // pred_check_branch
          %363 = sbr.rel (%p361) target = $region48
        $region47: #{tpu_custom_call.1} parent=35 // pred_region
          %s364 = sand.u32 %s26, 1
          %s365 = scalar_lea.sflag [#allocation11], %s364
          %s366 = sand.u32 %s127, 1
          %s367 = smul.addr %s366, 2
          %s368 = scalar_lea.vmem [#allocation10], %s367
          %s369 = sadd.s32 %s33, %s34
          %s370 = smul.u32 2, %s369
          %s372 = ssub.s32 32, 32
          %373 = vsyncadd %s365, %s372
          %s374 = smul.addr %s370, 16
          %s375 = scalar_lea.hbm %s3, %s374
          %s377 = sshll.u32 %s368, 4
          %s378 = int_to_ptr.vmem [resolvable:$true] %s377
          %380 = dma.hbm_to_vmem [thread:$0]  %s375, 32, %s378, %s365
        $region48: #{tpu_custom_call.1} parent=35 // pred_fallthru
          _
      $region36: #{tpu_custom_call.1} parent=5 // pred_fallthru
        _
      %p381 = scmp.le.s32.totalorder 1, %s26
      %p382 = scmp.lt.s32.totalorder %s26, 3
      %p383 = pnand %p381, %p382
      %p384 = pneg %p383
      // Predicated region
      $region49: #{tpu_custom_call.1} parent=5 // pred_check
        _
      $region50: #{tpu_custom_call.1} parent=5 // pred_check_branch
        %386 = sbr.rel (%p383) target = $region52
      $region51: #{tpu_custom_call.1} parent=5 // pred_region
        %s387 = ssub.s32 %s26, 1
        // Predicated region
        $region53: #{tpu_custom_call.1} parent=51 // pred_check
          %p388 = pneg %p59
        $region54: #{tpu_custom_call.1} parent=51 // pred_check_branch
          %390 = sbr.rel (%p388) target = $region56
        $region55: #{tpu_custom_call.1} parent=51 // pred_region
          %391 = dma.done [#allocation4], 128
        $region56: #{tpu_custom_call.1} parent=51 // pred_fallthru
          _
        %s392 = sand.u32 %s31, 1
        %s393 = scalar_lea.sflag [#allocation8], %s392
        %s394 = sand.u32 %s74, 1
        %s395 = smul.addr %s394, 256
        %s396 = scalar_lea.vmem [#allocation7], %s395
        // Predicated region
        $region57: #{tpu_custom_call.1} parent=51 // pred_check
          %p397 = pneg %p87
        $region58: #{tpu_custom_call.1} parent=51 // pred_check_branch
          %399 = sbr.rel (%p397) target = $region60
        $region59: #{tpu_custom_call.1} parent=51 // pred_region
          %400 = dma.done %s393, 4096
        $region60: #{tpu_custom_call.1} parent=51 // pred_fallthru
          _
        %s401 = sand.u32 %s31, 1
        %s402 = scalar_lea.sflag [#allocation8], %s401
        %s403 = sand.u32 %s102, 1
        %s404 = smul.addr %s403, 2
        %s405 = scalar_lea.vmem [#allocation9], %s404
        // Predicated region
        $region61: #{tpu_custom_call.1} parent=51 // pred_check
          %p406 = pneg %p115
        $region62: #{tpu_custom_call.1} parent=51 // pred_check_branch
          %408 = sbr.rel (%p406) target = $region64
        $region63: #{tpu_custom_call.1} parent=51 // pred_region
          %409 = dma.done %s402, 32
        $region64: #{tpu_custom_call.1} parent=51 // pred_fallthru
          _
        %s410 = sand.u32 %s31, 1
        %s411 = scalar_lea.sflag [#allocation11], %s410
        %s412 = sand.u32 %s130, 1
        %s413 = smul.addr %s412, 2
        %s414 = scalar_lea.vmem [#allocation10], %s413
        // Predicated region
        $region65: #{tpu_custom_call.1} parent=51 // pred_check
          %p415 = pneg %p143
        $region66: #{tpu_custom_call.1} parent=51 // pred_check_branch
          %417 = sbr.rel (%p415) target = $region68
        $region67: #{tpu_custom_call.1} parent=51 // pred_region
          %418 = dma.done %s411, 32
        $region68: #{tpu_custom_call.1} parent=51 // pred_fallthru
          _
        // Predicated region
        $region69: #{tpu_custom_call.1} parent=51 // pred_check
          %p419 = pneg %p164
        $region70: #{tpu_custom_call.1} parent=51 // pred_check_branch
          %421 = sbr.rel (%p419) target = $region72
        $region71: #{tpu_custom_call.1} parent=51 // pred_region
          %422 = dma.done [#allocation11], 128
        $region72: #{tpu_custom_call.1} parent=51 // pred_fallthru
          _
        // Predicated region
        $region73: #{tpu_custom_call.1} parent=51 // pred_check
          %p423 = pneg %p206
        $region74: #{tpu_custom_call.1} parent=51 // pred_check_branch
          %425 = sbr.rel (%p423) target = $region76
        $region75: #{tpu_custom_call.1} parent=51 // pred_region
          %426 = dma.done [#allocation14], 128
        $region76: #{tpu_custom_call.1} parent=51 // pred_fallthru
          _
        // Predicated region
        $region77: #{tpu_custom_call.1} parent=51 // pred_check
          %p427 = pneg %p227
        $region78: #{tpu_custom_call.1} parent=51 // pred_check_branch
          %429 = sbr.rel (%p427) target = $region80
        $region79: #{tpu_custom_call.1} parent=51 // pred_region
          %430 = dma.done [#allocation6], 16
        $region80: #{tpu_custom_call.1} parent=51 // pred_fallthru
          _
        %431 = sfence
        %p432 = pneg %p59
        %p433 = pneg %p56
        %s434 = sand.u32 %s31, 1
        %s435 = scalar_lea.sflag [#allocation8], %s434
        %s436 = sand.u32 %s74, 1
        %s437 = smul.addr %s436, 256
        %s438 = scalar_lea.vmem [#allocation7], %s437
        %p439 = pneg %p87
        %p440 = pneg %p84
        %s441 = sand.u32 %s31, 1
        %s442 = scalar_lea.sflag [#allocation8], %s441
        %s443 = sand.u32 %s102, 1
        %s444 = smul.addr %s443, 2
        %s445 = scalar_lea.vmem [#allocation9], %s444
        %p446 = pneg %p115
        %p447 = pneg %p112
        %s448 = sand.u32 %s31, 1
        %s449 = scalar_lea.sflag [#allocation11], %s448
        %s450 = sand.u32 %s130, 1
        %s451 = smul.addr %s450, 2
        %s452 = scalar_lea.vmem [#allocation10], %s451
        %p453 = pneg %p143
        %p454 = pneg %p140
        %p455 = pneg %p164
        %p456 = pneg %p161
        %p457 = pneg %p185
        %p458 = pneg %p182
        %p459 = pneg %p206
        %p460 = pneg %p203
        %p461 = pneg %p227
        %p462 = pneg %p224
        %p463 = pneg %p253
        %p464 = pneg %p250
        %s465 = sand.u32 %s240, 1
        %s466 = scalar_lea.sflag [#allocation5], %s465
        %s467 = sand.u32 %s240, 1
        %s468 = smul.addr %s467, 8
        %s469 = scalar_lea.vmem [#allocation16], %s468
        %s470 = sadd.s32 %s35, %s36
        %s471 = smul.u32 32, %s470
        %s472 = sadd.s32 %s35, %s36
        %s473 = smul.u32 2, %s472
        %s474 = sadd.s32 %s35, %s36
        %s475 = smul.u32 2, %s474
        %s477 = sld [smem:[#allocation15]]
        %s478 = sld [smem:[#allocation15 + $0x1]]
        %p479 = scmp.eq.s32.totalorder %s36, 0
        // Predicated region
        $region81: #{tpu_custom_call.1} parent=51 // pred_check
          %p480 = pneg %p479
        $region82: #{tpu_custom_call.1} parent=51 // pred_check_branch
          %482 = sbr.rel (%p480) target = $region84
        $region83: #{tpu_custom_call.1} parent=51 // pred_region
          %vm483 = vcmask 7168
          %484 = vst.msk [vmem:[#allocation2] sm:$0xff] %vm483, 0.0
        $region84: #{tpu_custom_call.1} parent=51 // pred_fallthru
          _
        %v485 = vld [vmem:[#allocation3] sm:$0xff]
        %v486 = vpack.c.bf16 %v485, %v485
        %v487 = vld [vmem:[%s396] sm:$0xff]
        %v488 = vld [vmem:[%s396 + $0x8] sm:$0xff]
        %v489 = vld [vmem:[%s396 + $0x10] sm:$0xff]
        %v490 = vld [vmem:[%s396 + $0x18] sm:$0xff]
        %v491 = vld [vmem:[%s396 + $0x20] sm:$0xff]
        %v492 = vld [vmem:[%s396 + $0x28] sm:$0xff]
        %v493 = vld [vmem:[%s396 + $0x30] sm:$0xff]
        %v494 = vld [vmem:[%s396 + $0x38] sm:$0xff]
        %v495 = vld [vmem:[%s396 + $0x40] sm:$0xff]
        %v496 = vld [vmem:[%s396 + $0x48] sm:$0xff]
        %v497 = vld [vmem:[%s396 + $0x50] sm:$0xff]
        %v498 = vld [vmem:[%s396 + $0x58] sm:$0xff]
        %v499 = vld [vmem:[%s396 + $0x60] sm:$0xff]
        %v500 = vld [vmem:[%s396 + $0x68] sm:$0xff]
        %v501 = vld [vmem:[%s396 + $0x70] sm:$0xff]
        %v502 = vld [vmem:[%s396 + $0x78] sm:$0xff]
        %v503 = vld [vmem:[%s396 + $0x80] sm:$0xff]
        %v504 = vld [vmem:[%s396 + $0x88] sm:$0xff]
        %v505 = vld [vmem:[%s396 + $0x90] sm:$0xff]
        %v506 = vld [vmem:[%s396 + $0x98] sm:$0xff]
        %v507 = vld [vmem:[%s396 + $0xa0] sm:$0xff]
        %v508 = vld [vmem:[%s396 + $0xa8] sm:$0xff]
        %v509 = vld [vmem:[%s396 + $0xb0] sm:$0xff]
        %v510 = vld [vmem:[%s396 + $0xb8] sm:$0xff]
        %v511 = vld [vmem:[%s396 + $0xc0] sm:$0xff]
        %v512 = vld [vmem:[%s396 + $0xc8] sm:$0xff]
        %v513 = vld [vmem:[%s396 + $0xd0] sm:$0xff]
        %v514 = vld [vmem:[%s396 + $0xd8] sm:$0xff]
        %v515 = vld [vmem:[%s396 + $0xe0] sm:$0xff]
        %v516 = vld [vmem:[%s396 + $0xe8] sm:$0xff]
        %v517 = vld [vmem:[%s396 + $0xf0] sm:$0xff]
        %v518 = vld [vmem:[%s396 + $0xf8] sm:$0xff]
        %v519 = vpack.c.bf16 %v488, %v487
        %v520 = vpack.c.bf16 %v490, %v489
        %v521 = vpack.c.bf16 %v492, %v491
        %v522 = vpack.c.bf16 %v494, %v493
        %v523 = vpack.c.bf16 %v496, %v495
        %v524 = vpack.c.bf16 %v498, %v497
        %v525 = vpack.c.bf16 %v500, %v499
        %v526 = vpack.c.bf16 %v502, %v501
        %v527 = vpack.c.bf16 %v504, %v503
        %v528 = vpack.c.bf16 %v506, %v505
        %v529 = vpack.c.bf16 %v508, %v507
        %v530 = vpack.c.bf16 %v510, %v509
        %v531 = vpack.c.bf16 %v512, %v511
        %v532 = vpack.c.bf16 %v514, %v513
        %v533 = vpack.c.bf16 %v516, %v515
        %v534 = vpack.c.bf16 %v518, %v517
        %535 = vmatprep.subr.bf16.mxu0 0
        %536 = vmatpush1.bf16.xpose.msra.mxu0 %v526
        %537 = vmatprep.subr.bf16.mxu0 0
        %538 = vmatpush1.bf16.xpose.msra.mxu0 %v525
        %539 = vmatprep.subr.bf16.mxu0 0
        %540 = vmatpush1.bf16.xpose.msra.mxu0 %v524
        %541 = vmatprep.subr.bf16.mxu0 0
        %542 = vmatpush1.bf16.xpose.msra.mxu0 %v523
        %543 = vmatprep.subr.bf16.mxu0 0
        %544 = vmatpush1.bf16.xpose.msra.mxu0 %v522
        %545 = vmatprep.subr.bf16.mxu0 0
        %546 = vmatpush1.bf16.xpose.msra.mxu0 %v521
        %547 = vmatprep.subr.bf16.mxu0 0
        %548 = vmatpush1.bf16.xpose.msra.mxu0 %v520
        %549 = vmatprep.subr.bf16.mxu0 0
        %550 = vmatpush1.bf16.xpose.msra.mxu0 %v519
        %551 = vmatprep.subr.bf16.mxu0 0
        %552 = vmatpush2.bf16.xpose.msra.mxu0 %v534
        %553 = vmatprep.subr.bf16.mxu0 0
        %554 = vmatpush2.bf16.xpose.msra.mxu0 %v533
        %555 = vmatprep.subr.bf16.mxu0 0
        %556 = vmatpush2.bf16.xpose.msra.mxu0 %v532
        %557 = vmatprep.subr.bf16.mxu0 0
        %558 = vmatpush2.bf16.xpose.msra.mxu0 %v531
        %559 = vmatprep.subr.bf16.mxu0 0
        %560 = vmatpush2.bf16.xpose.msra.mxu0 %v530
        %561 = vmatprep.subr.bf16.mxu0 0
        %562 = vmatpush2.bf16.xpose.msra.mxu0 %v529
        %563 = vmatprep.subr.bf16.mxu0 0
        %564 = vmatpush2.bf16.xpose.msra.mxu0 %v528
        %565 = vmatprep.subr.bf16.mxu0 0
        %566 = vmatpush2.bf16.xpose.msra.mxu0 %v527
        %567 = vmatprep.mubr.bf16.mxu0 0
        %568 = vmatmul.mubr.bf16.gmra.mxu0 %v486
        %v569 = vpop.f32.mrf.mxu0
        %v570 = vadd.f32 0.0, %v569
        %v571 = vpop.f32.mrf.mxu0
        %v572 = vadd.f32 0.0, %v571
        %v573 = vpop.f32.mrf.mxu0
        %v574 = vpop.f32.mrf.mxu0
        %575 = vdwg.mxu0
        %v576 = vld [vmem:[%s405] sm:$0x3]
        %v578 = vlaneseq
        %v579 = vshrl.u32 %v578, 7
        %v580 = vsub.s32 0, %v579
        %v581 = vrot.slane %v576, %v580
        %v582 = vlaneseq
        %v583 = vshrl.u32 %v582, 7
        %v584 = vsub.s32 1, %v583
        %v585 = vrot.slane %v576, %v584
        %v588 = vmul.f32 %v570, %v581
        %v589 = vmul.f32 %v572, %v585
        %v590 = vstv %s477
        %v591 = vmul.f32 %v588, %v590
        %v592 = vmul.f32 %v589, %v590
        %v593 = vstv %s478
        %v594 = vsub.f32 %v591, %v593
        %v595 = vsub.f32 %v592, %v593
        %v596 = vld [vmem:[%s414] sm:$0x3]
        %vm597 = vcmp.gt.f32.partialorder %v596, 0.5
        %v598 = vmul.f32 %v594, 1.442695
        %v599 = vpow.pop %v598
        %v600 = vmul.f32 %v595, 1.442695
        %v601 = vpow.pop %v600
        %v602 = vsel %vm597, 1, 0
        %v603 = vlaneseq
        %v604 = vshrl.u32 %v603, 7
        %v605 = vsub.s32 0, %v604
        %v606 = vrot.slane %v602, %v605
        %v607 = vlaneseq
        %v608 = vshrl.u32 %v607, 7
        %v609 = vsub.s32 1, %v608
        %v610 = vrot.slane %v602, %v609
        %vm611 = vcmp.eq.s32.totalorder %v606, 1
        %vm612 = vcmp.eq.s32.totalorder %v610, 1
        %v613 = vsel %vm611, %v599, 0.0
        %v614 = vsel %vm612, %v601, 0.0
        %v615 = vld [vmem:[#allocation2] sm:$0xff]
        %v616 = vadd.f32 %v613, %v614
        %617 = vadd.xlane.f32.xlu0 %v616
        %v618 = vpop.xlane.xlu0 %617
        %v619 = vadd.f32 %v615, %v618
        %vm620 = vcmask 7168
        %621 = vst.msk [vmem:[#allocation2] sm:$0xff] %vm620, %v619
        // Predicated region
        $region85: #{tpu_custom_call.1} parent=51 // pred_check
          %p622 = pneg %p479
        $region86: #{tpu_custom_call.1} parent=51 // pred_check_branch
          %624 = sbr.rel (%p622) target = $region88
        $region87: #{tpu_custom_call.1} parent=51 // pred_region
          %v625 = vld [vmem:[#allocation3] sm:$0xff]
          %v626 = vld [vmem:[#allocation12] sm:$0xff]
          %v627 = vld [vmem:[%s5] sm:$0xff]
          %v628 = vld [vmem:[#allocation13] sm:$0xff]
          %v629 = vmul.f32 %v625, %v626
          %630 = vadd.xlane.f32.xlu0 %v629
          %v631 = vpop.xlane.xlu0 %630
          %v632 = vsub.f32 0.0, %v631
          %v633 = vmul.f32 %v632, %v590
          %v634 = vadd.f32 %v633, %v593
          %v635 = vmul.f32 %v634, 1.442695
          %v636 = vpow.pop %v635
          %637 = vmatprep.subr.mxu0 0.0
          %638 = vmatpush1.xpose.msra.mxu0 0.0
          %639 = vmatprep.subr.mxu0 0.0
          %640 = vmatpush1.xpose.msra.mxu0 0.0
          %641 = vmatprep.subr.mxu0 0.0
          %642 = vmatpush1.xpose.msra.mxu0 0.0
          %643 = vmatprep.subr.mxu0 0.0
          %644 = vmatpush1.xpose.msra.mxu0 0.0
          %645 = vmatprep.subr.mxu0 0.0
          %646 = vmatpush1.xpose.msra.mxu0 0.0
          %647 = vmatprep.subr.mxu0 0.0
          %648 = vmatpush1.xpose.msra.mxu0 0.0
          %649 = vmatprep.subr.mxu0 0.0
          %650 = vmatpush1.xpose.msra.mxu0 0.0
          %651 = vmatprep.subr.mxu0 0.0
          %652 = vmatpush1.xpose.msra.mxu0 0.0
          %653 = vmatprep.subr.mxu0 0.0
          %654 = vmatpush1.xpose.msra.mxu0 0.0
          %655 = vmatprep.subr.mxu0 0.0
          %656 = vmatpush1.xpose.msra.mxu0 0.0
          %657 = vmatprep.subr.mxu0 0.0
          %658 = vmatpush1.xpose.msra.mxu0 0.0
          %659 = vmatprep.subr.mxu0 0.0
          %660 = vmatpush1.xpose.msra.mxu0 0.0
          %661 = vmatprep.subr.mxu0 0.0
          %662 = vmatpush1.xpose.msra.mxu0 0.0
          %663 = vmatprep.subr.mxu0 0.0
          %664 = vmatpush1.xpose.msra.mxu0 0.0
          %665 = vmatprep.subr.mxu0 0.0
          %666 = vmatpush1.xpose.msra.mxu0 0.0
          %667 = vmatprep.subr.mxu0 0.0
          %668 = vmatpush1.xpose.msra.mxu0 %v626
          %669 = vmatprep.subr.mxu0 0.0
          %670 = vmatpush2.xpose.msra.mxu0 0.0
          %671 = vmatprep.subr.mxu0 0.0
          %672 = vmatpush2.xpose.msra.mxu0 0.0
          %673 = vmatprep.subr.mxu0 0.0
          %674 = vmatpush2.xpose.msra.mxu0 0.0
          %675 = vmatprep.subr.mxu0 0.0
          %676 = vmatpush2.xpose.msra.mxu0 0.0
          %677 = vmatprep.subr.mxu0 0.0
          %678 = vmatpush2.xpose.msra.mxu0 0.0
          %679 = vmatprep.subr.mxu0 0.0
          %680 = vmatpush2.xpose.msra.mxu0 0.0
          %681 = vmatprep.subr.mxu0 0.0
          %682 = vmatpush2.xpose.msra.mxu0 0.0
          %683 = vmatprep.subr.mxu0 0.0
          %684 = vmatpush2.xpose.msra.mxu0 0.0
          %685 = vmatprep.subr.mxu0 0.0
          %686 = vmatpush2.xpose.msra.mxu0 0.0
          %687 = vmatprep.subr.mxu0 0.0
          %688 = vmatpush2.xpose.msra.mxu0 0.0
          %689 = vmatprep.subr.mxu0 0.0
          %690 = vmatpush2.xpose.msra.mxu0 0.0
          %691 = vmatprep.subr.mxu0 0.0
          %692 = vmatpush2.xpose.msra.mxu0 0.0
          %693 = vmatprep.subr.mxu0 0.0
          %694 = vmatpush2.xpose.msra.mxu0 0.0
          %695 = vmatprep.subr.mxu0 0.0
          %696 = vmatpush2.xpose.msra.mxu0 0.0
          %697 = vmatprep.subr.mxu0 0.0
          %698 = vmatpush2.xpose.msra.mxu0 0.0
          %699 = vmatprep.subr.mxu0 0.0
          %700 = vmatpush2.xpose.msra.mxu0 0.0
          %701 = vmatprep.mubr.f32.mxu0 0.0
          %702 = vmatmul.mubr.f32.gmra.mxu0 %v625
          %v703 = vpop.f32.mrf.mxu0
          %v704 = vadd.f32 0.0, %v703
          %v705 = vpop.f32.mrf.mxu0
          %706 = vdwg.mxu0
          %v707 = vmul.f32 %v704, %v590
          %v708 = vsub.f32 %v707, %v593
          %v709 = vlaneseq
          %v710 = vshrl.u32 %v709, 7
          %v711 = vlaneseq
          %v712 = vand.u32 %v711, 127
          %vm713 = vcmp.ne.s32.totalorder %v710, %v712
          %v714 = vmul.f32 %v708, 1.442695
          %v715 = vpow.pop %v714
          %v716 = vsel %vm713, %v715, 0.0
          %vm717 = vcmask 64512
          %v718 = vsel %vm717, %v716, 0.0
          %719 = vadd.xlane.f32.xlu0 %v718
          %v720 = vpop.xlane.xlu0 %719
          %721 = vmatprep.subr.mxu0 0.0
          %722 = vmatpush1.xpose.msra.mxu0 0.0
          %723 = vmatprep.subr.mxu0 0.0
          %724 = vmatpush1.xpose.msra.mxu0 0.0
          %725 = vmatprep.subr.mxu0 0.0
          %726 = vmatpush1.xpose.msra.mxu0 0.0
          %727 = vmatprep.subr.mxu0 0.0
          %728 = vmatpush1.xpose.msra.mxu0 0.0
          %729 = vmatprep.subr.mxu0 0.0
          %730 = vmatpush1.xpose.msra.mxu0 0.0
          %731 = vmatprep.subr.mxu0 0.0
          %732 = vmatpush1.xpose.msra.mxu0 0.0
          %733 = vmatprep.subr.mxu0 0.0
          %734 = vmatpush1.xpose.msra.mxu0 0.0
          %735 = vmatprep.subr.mxu0 0.0
          %736 = vmatpush1.xpose.msra.mxu0 0.0
          %737 = vmatprep.subr.mxu0 0.0
          %738 = vmatpush1.xpose.msra.mxu0 0.0
          %739 = vmatprep.subr.mxu0 0.0
          %740 = vmatpush1.xpose.msra.mxu0 0.0
          %741 = vmatprep.subr.mxu0 0.0
          %742 = vmatpush1.xpose.msra.mxu0 0.0
          %743 = vmatprep.subr.mxu0 0.0
          %744 = vmatpush1.xpose.msra.mxu0 0.0
          %745 = vmatprep.subr.mxu0 0.0
          %746 = vmatpush1.xpose.msra.mxu0 0.0
          %747 = vmatprep.subr.mxu0 0.0
          %748 = vmatpush1.xpose.msra.mxu0 0.0
          %749 = vmatprep.subr.mxu0 0.0
          %750 = vmatpush1.xpose.msra.mxu0 0.0
          %751 = vmatprep.subr.mxu0 0.0
          %752 = vmatpush1.xpose.msra.mxu0 %v628
          %753 = vmatprep.subr.mxu0 0.0
          %754 = vmatpush2.xpose.msra.mxu0 0.0
          %755 = vmatprep.subr.mxu0 0.0
          %756 = vmatpush2.xpose.msra.mxu0 0.0
          %757 = vmatprep.subr.mxu0 0.0
          %758 = vmatpush2.xpose.msra.mxu0 0.0
          %759 = vmatprep.subr.mxu0 0.0
          %760 = vmatpush2.xpose.msra.mxu0 0.0
          %761 = vmatprep.subr.mxu0 0.0
          %762 = vmatpush2.xpose.msra.mxu0 0.0
          %763 = vmatprep.subr.mxu0 0.0
          %764 = vmatpush2.xpose.msra.mxu0 0.0
          %765 = vmatprep.subr.mxu0 0.0
          %766 = vmatpush2.xpose.msra.mxu0 0.0
          %767 = vmatprep.subr.mxu0 0.0
          %768 = vmatpush2.xpose.msra.mxu0 0.0
          %769 = vmatprep.subr.mxu0 0.0
          %770 = vmatpush2.xpose.msra.mxu0 0.0
          %771 = vmatprep.subr.mxu0 0.0
          %772 = vmatpush2.xpose.msra.mxu0 0.0
          %773 = vmatprep.subr.mxu0 0.0
          %774 = vmatpush2.xpose.msra.mxu0 0.0
          %775 = vmatprep.subr.mxu0 0.0
          %776 = vmatpush2.xpose.msra.mxu0 0.0
          %777 = vmatprep.subr.mxu0 0.0
          %778 = vmatpush2.xpose.msra.mxu0 0.0
          %779 = vmatprep.subr.mxu0 0.0
          %780 = vmatpush2.xpose.msra.mxu0 0.0
          %781 = vmatprep.subr.mxu0 0.0
          %782 = vmatpush2.xpose.msra.mxu0 0.0
          %783 = vmatprep.subr.mxu0 0.0
          %784 = vmatpush2.xpose.msra.mxu0 0.0
          %785 = vmatprep.mubr.f32.mxu0 0.0
          %786 = vmatmul.mubr.f32.gmra.mxu0 %v627
          %v787 = vpop.f32.mrf.mxu0
          %v788 = vadd.f32 0.0, %v787
          %v789 = vpop.f32.mrf.mxu0
          %790 = vdwg.mxu0
          %v791 = vmul.f32 %v788, %v590
          %v792 = vsub.f32 %v791, %v593
          %v793 = vsel %vm717, %v792, -inf
          %794 = vmax.xlane.f32.xlu0 %v793
          %v795 = vpop.xlane.xlu0 %794
          %v796 = vsub.f32 %v792, %v795
          %v797 = vmul.f32 %v796, 1.442695
          %v798 = vpow.pop %v797
          %v799 = vsel %vm717, %v798, 0.0
          %800 = vadd.xlane.f32.xlu0 %v799
          %v801 = vpop.xlane.xlu0 %800
          %v802 = vlog2.pop %v801
          %v803 = vmul.f32 %v802, 0.6931472
          %v804 = vadd.f32 %v795, %v803
          %v805 = vmul.f32 %v627, %v628
          %806 = vadd.xlane.f32.xlu0 %v805
          %v807 = vpop.xlane.xlu0 %806
          %v808 = vmul.f32 %v807, %v590
          %v809 = vsub.f32 %v808, %v593
          %v810 = vsub.f32 %v804, %v809
          %vm811 = vcmp.eq.s32.totalorder %v712, 0
          %v812 = vld [vmem:[#allocation2] sm:$0xff]
          %814 = vset.pattern.permute.xlu0 0
          %815 = vperm.xlu0 %814, %v812
          %v816 = vpop.permute.xlu0 %815
          %v818 = vsel %vm811, %v816, 0.0
          %vm819 = vcmp.eq.s32.totalorder %v712, 1
          %v820 = vsel %vm819, %v636, %v818
          %vm821 = vcmp.eq.s32.totalorder %v712, 2
          %v822 = vsel %vm821, %v720, %v820
          %vm823 = vcmp.eq.s32.totalorder %v712, 3
          %v824 = vsel %vm823, %v810, %v822
          %825 = vst [vmem:[%s469] sm:$0xff] %v824
        $region88: #{tpu_custom_call.1} parent=51 // pred_fallthru
          _
        %s826 = sand.u32 %s240, 1
        %s827 = scalar_lea.sflag [#allocation5], %s826
        %s828 = sand.u32 %s240, 1
        %s829 = smul.addr %s828, 8
        %s830 = scalar_lea.vmem [#allocation16], %s829
        // Predicated region
        $region89: #{tpu_custom_call.1} parent=51 // pred_check
          %p831 = pneg %p250
        $region90: #{tpu_custom_call.1} parent=51 // pred_check_branch
          %833 = sbr.rel (%p831) target = $region92
        $region91: #{tpu_custom_call.1} parent=51 // pred_region
          %s835 = ssub.s32 128, 128
          %836 = vsyncadd %s827, %s835
          %s837 = smul.addr %s35, 128
          %s838 = scalar_lea.hbm %s8, %s837
          %s840 = sshll.u32 %s830, 4
          %s841 = int_to_ptr.vmem [resolvable:$true] %s840
          %843 = dma.vmem_to_hbm [thread:$0]  %s841, 128, %s838, %s827
        $region92: #{tpu_custom_call.1} parent=51 // pred_fallthru
          _
      $region52: #{tpu_custom_call.1} parent=5 // pred_fallthru
        _
      %p844 = scmp.le.s32.totalorder 2, %s26
      // Predicated region
      $region93: #{tpu_custom_call.1} parent=5 // pred_check
        %p845 = pneg %p844
      $region94: #{tpu_custom_call.1} parent=5 // pred_check_branch
        %847 = sbr.rel (%p845) target = $region96
      $region95: #{tpu_custom_call.1} parent=5 // pred_region
        %s848 = ssub.s32 %s26, 2
        // Predicated region
        $region97: #{tpu_custom_call.1} parent=95 // pred_check
          %p849 = pneg %p256
        $region98: #{tpu_custom_call.1} parent=95 // pred_check_branch
          %851 = sbr.rel (%p849) target = $region100
        $region99: #{tpu_custom_call.1} parent=95 // pred_region
          %s852 = sand.u32 %s241, 1
          %s853 = scalar_lea.sflag [#allocation5], %s852
          %s854 = sand.u32 %s241, 1
          %s855 = smul.addr %s854, 8
          %s856 = scalar_lea.vmem [#allocation16], %s855
          %857 = dma.done %s853, 128
        $region100: #{tpu_custom_call.1} parent=95 // pred_fallthru
          _
      $region96: #{tpu_custom_call.1} parent=5 // pred_fallthru
        _
    $region6: #{tpu_custom_call.1} parent=1 // loop_footer
      %s30 = sadd.s32 1, %s26
    $region7: #{tpu_custom_call.1} parent=1 // loop_footer_branch
      %25 = sbr.rel target = $region3
    $region8: #{tpu_custom_call.1} parent=1 // loop_exit
      _
    %858 = vsyncpa [#allocation4], 1
    %s859 = scalar_lea.sflag [#allocation4], 1
    %860 = vsyncpa %s859, 1
    %861 = vsyncpa [#allocation8], 1
    %s862 = scalar_lea.sflag [#allocation8], 1
    %863 = vsyncpa %s862, 1
    %864 = vsyncpa [#allocation11], 1
    %s865 = scalar_lea.sflag [#allocation11], 1
    %866 = vsyncpa %s865, 1
    %867 = vsyncpa [#allocation14], 1
    %868 = vsyncpa [#allocation5], 1
    %s869 = scalar_lea.sflag [#allocation5], 1
    %870 = vsyncpa %s869, 1
    %871 = vsyncpa [#allocation6], 1
    %s872 = scalar_lea.sflag [#allocation6], 1
    %873 = vsyncpa %s872, 1

</llo_original>
